<compile_context>
chip_gen: v5e
topology: v5e:2x2
jax: 0.10.0
libtpu: 0.0.40
codegen_flags: <defaults>
</compile_context>

<pallas_src>
import functools

import jax
import jax.numpy as jnp
from jax.experimental import pallas as pl
from jax.experimental.pallas import tpu as pltpu


def _focal_loss_kernel(p_ref, t_ref, a_ref, out_ref, acc_ref, *,
                       gamma, inv_count, total_s):
    n = pl.program_id(0)
    j = pl.program_id(1)

    @pl.when(jnp.logical_and(n == 0, j == 0))
    def _():
        acc_ref[...] = jnp.zeros_like(acc_ref)

    p = p_ref[0].astype(jnp.float32)           # (C, TS) probabilities
    tgt = t_ref[0]                             # (1, TS) int32 class ids
    a = a_ref[...].astype(jnp.float32)         # (C, 1) per-class weights

    C, TS = p.shape
    cls = jax.lax.broadcasted_iota(jnp.int32, (C, TS), 0)     # class id / sublane
    onehot = cls == tgt                                        # (C, TS)

    # lanes past the true spatial extent (ragged last tile) contribute 0
    lane = jax.lax.broadcasted_iota(jnp.int32, (1, TS), 1)
    valid = (j * TS + lane) < total_s                          # (1, TS) bool

    # gather p[target] over the class (sublane) axis, then log once
    pt = jnp.sum(jnp.where(onehot, p, 0.0), axis=0, keepdims=True)   # (1, TS)
    pt = jnp.where(valid, pt, 1.0)            # -> logpt == 0 on padded lanes
    logpt = jnp.log(pt)                       # single EUP op per element

    # gather alpha[target]  (all-ones when alpha is None)
    at = jnp.sum(jnp.where(onehot, a, 0.0), axis=0, keepdims=True)   # (1, TS)
    at = jnp.where(valid, at, 0.0)

    # focal weight (1 - pt) ** gamma, specialized on the static gamma
    if gamma == 0.0:
        loss = -(at * logpt)
    else:
        omp = 1.0 - pt
        if float(gamma).is_integer() and 0 < gamma <= 8:
            w = omp
            for _ in range(int(gamma) - 1):
                w = w * omp                    # VPU multiplies, no EUP pow
        else:
            w = jnp.exp(jnp.float32(gamma) * jnp.log(omp))
        loss = -(w * at * logpt)

    acc_ref[...] += jnp.where(valid, loss, 0.0)

    @pl.when(jnp.logical_and(n == pl.num_programs(0) - 1,
                             j == pl.num_programs(1) - 1))
    def _():
        # one cross-lane reduce + one (1, 1) store for the whole kernel
        out_ref[...] = (jnp.sum(acc_ref[...], keepdims=True)
                        * jnp.float32(inv_count))


def focal_loss(probs, target, *, gamma=0.0, alpha=None, size_average=True,
               max_tile_s=4096):
    """Pallas implementation of FocalLoss.forward.

    probs  : (N, C, *spatial) or (M, C) probabilities (already softmaxed; the
             PyTorch module applies torch.log(input) directly).
    target : integer class indices with N*prod(spatial) (or M) elements.
    """
    x = probs
    if x.ndim > 2:
        N, C = x.shape[0], x.shape[1]
        x = x.reshape(N, C, -1)            # (N, C, S): pure reshape, no transpose
    else:
        # 2-D (M, C) path: one transpose into the lane-dense layout (cold path).
        M, C = x.shape
        x = jnp.transpose(x)[None, ...]    # (1, C, M)
    N, C, S = x.shape

    tgt = target.reshape(N, 1, S).astype(jnp.int32)

    if alpha is None:
        a = jnp.ones((C, 1), jnp.float32)
    elif isinstance(alpha, (float, int)):
        if C != 2:
            raise ValueError("scalar alpha implies a binary (C == 2) problem")
        a = jnp.array([[alpha], [1.0 - alpha]], jnp.float32)
    else:
        a = jnp.asarray(alpha, jnp.float32).reshape(C, 1)

    assert max_tile_s % 128 == 0
    tile_s = S if S <= max_tile_s else max_tile_s   # full dim or 128-multiple
    num_s_tiles = pl.cdiv(S, tile_s)

    inv_count = (1.0 / (N * S)) if size_average else 1.0

    kernel = functools.partial(_focal_loss_kernel, gamma=float(gamma),
                               inv_count=float(inv_count), total_s=S)

    # NOTE: on v7x the reduction could additionally be split across the two
    # TensorCores (leading parallel grid axis + (2, 1) output); kept single-core
    # here since the kernel is HBM-bandwidth bound.
    out = pl.pallas_call(
        kernel,
        out_shape=jax.ShapeDtypeStruct((1, 1), jnp.float32),
        grid_spec=pltpu.PrefetchScalarGridSpec(
            num_scalar_prefetch=0,
            grid=(N, num_s_tiles),
            in_specs=[
                pl.BlockSpec((1, C, tile_s), lambda n, j: (n, 0, j)),  # probs
                pl.BlockSpec((1, 1, tile_s), lambda n, j: (n, 0, j)),  # targets
                pl.BlockSpec((C, 1), lambda n, j: (0, 0)),             # alpha
            ],
            out_specs=pl.BlockSpec((1, 1), lambda n, j: (0, 0)),       # scalar
            scratch_shapes=[pltpu.VMEM((1, tile_s), jnp.float32)],     # accum
        ),
        compiler_params=pltpu.CompilerParams(
            dimension_semantics=("arbitrary", "arbitrary")),
    )(x, tgt, a)

    return out[0, 0]


def _focal_loss_ref(probs, target, *, gamma=0.0, alpha=None, size_average=True):
    """Pure-JAX reference mirroring the PyTorch module."""
    x = probs
    if x.ndim > 2:
        N, C = x.shape[0], x.shape[1]
        x = jnp.transpose(x.reshape(N, C, -1), (0, 2, 1)).reshape(-1, C)
    M, C = x.shape
    tgt = target.reshape(-1).astype(jnp.int32)
    logpt = jnp.log(x)[jnp.arange(M), tgt]
    pt = jnp.exp(logpt)
    if alpha is not None:
        if isinstance(alpha, (float, int)):
            a = jnp.array([alpha, 1.0 - alpha], jnp.float32)
        else:
            a = jnp.asarray(alpha, jnp.float32)
        logpt = logpt * a[tgt]
    losses = -jnp.power(1.0 - pt, gamma) * logpt
    return losses.mean() if size_average else losses.sum()


if __name__ == "__main__":
    key = jax.random.PRNGKey(0)
    k1, k2 = jax.random.split(key)

    N, C, H, W = 2, 4, 16, 16
    logits = jax.random.normal(k1, (N, C, H, W), jnp.float32)
    probs = jax.nn.softmax(logits, axis=1)                      # NCHW probabilities
    target = jax.random.randint(k2, (N, H, W), 0, C, jnp.int32)

    gamma = 2.0
    alpha = [0.1, 0.2, 0.3, 0.4]      # per-class weights (len == C)

    out = focal_loss(probs, target, gamma=gamma, alpha=alpha, size_average=True)
    out = jax.block_until_ready(out)
    ref = _focal_loss_ref(probs, target, gamma=gamma, alpha=alpha,
                          size_average=True)
    assert jnp.allclose(out, ref, rtol=1e-5, atol=1e-6), (out, ref)

    # also exercise the gamma==0 / no-alpha / sum-reduction path
    out2 = focal_loss(probs, target, gamma=0.0, alpha=None, size_average=False)
    out2 = jax.block_until_ready(out2)
    ref2 = _focal_loss_ref(probs, target, gamma=0.0, alpha=None,
                           size_average=False)
    assert jnp.allclose(out2, ref2, rtol=1e-5, atol=1e-5), (out2, ref2)

    print("KERNEL_OK")
</pallas_src>

<mosaic_0001>
module attributes {stable_mosaic.version = 11 : i64} {
  func.func @_focal_loss_kernel(%arg0: i32, %arg1: i32, %arg2: memref<1x4x256xf32, #tpu.memory_space<vmem>>, %arg3: memref<1x1x256xi32, #tpu.memory_space<vmem>>, %arg4: memref<4x1xf32, #tpu.memory_space<vmem>>, %arg5: memref<1x1xf32, #tpu.memory_space<vmem>>, %arg6: memref<1x256xf32, #tpu.memory_space<vmem>>) attributes {dimension_semantics = [#tpu.dimension_semantics<arbitrary>, #tpu.dimension_semantics<arbitrary>], iteration_bounds = array<i64: 2, 1>, scalar_prefetch = 0 : i64, scratch_operands = 1 : i64, tpu.core_type = #tpu.core_type<tc>, window_params = [{transform_indices = @transform_0, window_bounds = array<i64: 1, 4, 256>}, {transform_indices = @transform_1, window_bounds = array<i64: 1, 1, 256>}, {pipeline_mode = #tpu.pipeline_mode<synchronous>, transform_indices = @transform_2, window_bounds = array<i64: 4, 1>}, {pipeline_mode = #tpu.pipeline_mode<synchronous>, transform_indices = @transform_3, window_bounds = array<i64: 1, 1>}]} {
    %c0_i32 = arith.constant 0 : i32
    %0 = arith.cmpi eq, %arg0, %c0_i32 : i32
    %c0_i32_0 = arith.constant 0 : i32
    %1 = arith.cmpi eq, %arg1, %c0_i32_0 : i32
    %2 = arith.andi %0, %1 : i1
    %3 = arith.extui %2 : i1 to i32
    %c0_i32_1 = arith.constant 0 : i32
    %4 = arith.cmpi ne, %3, %c0_i32_1 : i32
    scf.if %4 {
      %cst_24 = arith.constant 0.000000e+00 : f32
      %51 = vector.broadcast %cst_24 : f32 to vector<1x256xf32>
      %c0_25 = arith.constant 0 : index
      %c0_26 = arith.constant 0 : index
      %52 = vector.load %arg6[%c0_25, %c0_26] : memref<1x256xf32, #tpu.memory_space<vmem>>, vector<1x256xf32>
      tpu.vector_store %arg6[%c0_25, %c0_26], %51 {strides = array<i32>} : memref<1x256xf32, #tpu.memory_space<vmem>>, vector<1x256xf32>,
    } else {
    }
    %c0 = arith.constant 0 : index
    %c0_2 = arith.constant 0 : index
    %c0_3 = arith.constant 0 : index
    %5 = vector.load %arg2[%c0, %c0_2, %c0_3] : memref<1x4x256xf32, #tpu.memory_space<vmem>>, vector<1x4x256xf32>
    %6 = vector.shape_cast %5 : vector<1x4x256xf32> to vector<4x256xf32>
    %c0_4 = arith.constant 0 : index
    %c0_5 = arith.constant 0 : index
    %c0_6 = arith.constant 0 : index
    %7 = vector.load %arg3[%c0_4, %c0_5, %c0_6] : memref<1x1x256xi32, #tpu.memory_space<vmem>>, vector<1x1x256xi32>
    %8 = vector.shape_cast %7 : vector<1x1x256xi32> to vector<1x256xi32>
    %c0_7 = arith.constant 0 : index
    %c0_8 = arith.constant 0 : index
    %9 = vector.load %arg4[%c0_7, %c0_8] : memref<4x1xf32, #tpu.memory_space<vmem>>, vector<4x1xf32>
    %10 = tpu.iota {dimensions = array<i32: 0>} : vector<4x256xi32>
    %11 = vector.broadcast %8 : vector<1x256xi32> to vector<4x256xi32>
    %12 = arith.cmpi eq, %10, %11 : vector<4x256xi32>
    %13 = tpu.iota {dimensions = array<i32: 1>} : vector<1x256xi32>
    %c256_i32 = arith.constant 256 : i32
    %14 = arith.muli %arg1, %c256_i32 : i32
    %15 = vector.broadcast %14 : i32 to vector<1x256xi32>
    %16 = arith.addi %15, %13 : vector<1x256xi32>
    %c256_i32_9 = arith.constant 256 : i32
    %17 = vector.broadcast %c256_i32_9 : i32 to vector<1x256xi32>
    %18 = arith.cmpi slt, %16, %17 : vector<1x256xi32>
    %cst = arith.constant 0.000000e+00 : f32
    %19 = vector.broadcast %cst : f32 to vector<4x256xf32>
    %20 = arith.select %12, %6, %19 : vector<4x256xi1>, vector<4x256xf32>
    %cst_10 = arith.constant dense<0.000000e+00> : vector<256xf32>
    %21 = vector.multi_reduction <add>, %20, %cst_10 [0] : vector<4x256xf32> to vector<256xf32>
    %22 = vector.shape_cast %21 : vector<256xf32> to vector<1x256xf32>
    %cst_11 = arith.constant 1.000000e+00 : f32
    %23 = vector.broadcast %cst_11 : f32 to vector<1x256xf32>
    %24 = arith.select %18, %22, %23 : vector<1x256xi1>, vector<1x256xf32>
    %25 = math.log %24 : vector<1x256xf32>
    %cst_12 = arith.constant 0.000000e+00 : f32
    %26 = vector.shape_cast %9 : vector<4x1xf32> to vector<4x1xf32>
    %27 = vector.broadcast %26 : vector<4x1xf32> to vector<4x256xf32>
    %28 = vector.broadcast %cst_12 : f32 to vector<4x256xf32>
    %29 = arith.select %12, %27, %28 : vector<4x256xi1>, vector<4x256xf32>
    %cst_13 = arith.constant dense<0.000000e+00> : vector<256xf32>
    %30 = vector.multi_reduction <add>, %29, %cst_13 [0] : vector<4x256xf32> to vector<256xf32>
    %31 = vector.shape_cast %30 : vector<256xf32> to vector<1x256xf32>
    %cst_14 = arith.constant 0.000000e+00 : f32
    %32 = vector.broadcast %cst_14 : f32 to vector<1x256xf32>
    %33 = arith.select %18, %31, %32 : vector<1x256xi1>, vector<1x256xf32>
    %cst_15 = arith.constant 1.000000e+00 : f32
    %34 = vector.broadcast %cst_15 : f32 to vector<1x256xf32>
    %35 = arith.subf %34, %24 : vector<1x256xf32>
    %36 = arith.mulf %35, %35 : vector<1x256xf32>
    %37 = arith.mulf %36, %33 : vector<1x256xf32>
    %38 = arith.mulf %37, %25 : vector<1x256xf32>
    %cst_16 = arith.constant 0.000000e+00 : f32
    %39 = vector.broadcast %cst_16 : f32 to vector<1x256xf32>
    %40 = arith.subf %39, %38 : vector<1x256xf32>
    %c0_17 = arith.constant 0 : index
    %c0_18 = arith.constant 0 : index
    %41 = vector.load %arg6[%c0_17, %c0_18] : memref<1x256xf32, #tpu.memory_space<vmem>>, vector<1x256xf32>
    %cst_19 = arith.constant 0.000000e+00 : f32
    %42 = vector.broadcast %cst_19 : f32 to vector<1x256xf32>
    %43 = arith.select %18, %40, %42 : vector<1x256xi1>, vector<1x256xf32>
    %44 = arith.addf %41, %43 : vector<1x256xf32>
    %c0_20 = arith.constant 0 : index
    %c0_21 = arith.constant 0 : index
    %45 = vector.load %arg6[%c0_20, %c0_21] : memref<1x256xf32, #tpu.memory_space<vmem>>, vector<1x256xf32>
    tpu.vector_store %arg6[%c0_20, %c0_21], %44 {strides = array<i32>} : memref<1x256xf32, #tpu.memory_space<vmem>>, vector<1x256xf32>,
    %c1_i32 = arith.constant 1 : i32
    %46 = arith.cmpi eq, %arg0, %c1_i32 : i32
    %c0_i32_22 = arith.constant 0 : i32
    %47 = arith.cmpi eq, %arg1, %c0_i32_22 : i32
    %48 = arith.andi %46, %47 : i1
    %49 = arith.extui %48 : i1 to i32
    %c0_i32_23 = arith.constant 0 : i32
    %50 = arith.cmpi ne, %49, %c0_i32_23 : i32
    scf.if %50 {
      %c0_24 = arith.constant 0 : index
      %c0_25 = arith.constant 0 : index
      %51 = vector.load %arg6[%c0_24, %c0_25] : memref<1x256xf32, #tpu.memory_space<vmem>>, vector<1x256xf32>
      %52 = vector.shape_cast %51 : vector<1x256xf32> to vector<1x1x256xf32>
      %cst_26 = arith.constant dense<0.000000e+00> : vector<1xf32>
      %53 = vector.multi_reduction <add>, %52, %cst_26 [1, 2] : vector<1x1x256xf32> to vector<1xf32>
      %54 = vector.shape_cast %53 : vector<1xf32> to vector<1x1x1xf32>
      %55 = vector.extract %54[0, 0, 0] : f32 from vector<1x1x1xf32>
      %56 = vector.broadcast %55 : f32 to vector<1x1xf32>
      %cst_27 = arith.constant 0.001953125 : f32
      %57 = vector.broadcast %cst_27 : f32 to vector<1x1xf32>
      %58 = arith.mulf %56, %57 : vector<1x1xf32>
      %c0_28 = arith.constant 0 : index
      %c0_29 = arith.constant 0 : index
      %59 = vector.load %arg5[%c0_28, %c0_29] : memref<1x1xf32, #tpu.memory_space<vmem>>, vector<1x1xf32>
      tpu.vector_store %arg5[%c0_28, %c0_29], %58 {strides = array<i32>} : memref<1x1xf32, #tpu.memory_space<vmem>>, vector<1x1xf32>,
    } else {
    }
    return
  }
  func.func @transform_0(%arg0: i32, %arg1: i32) -> (i32, i32, i32) {
    %c0_i32 = arith.constant 0 : i32
    %c0_i32_0 = arith.constant 0 : i32
    return %arg0, %c0_i32, %arg1 : i32, i32, i32
  }
  func.func @transform_1(%arg0: i32, %arg1: i32) -> (i32, i32, i32) {
    %c0_i32 = arith.constant 0 : i32
    %c0_i32_0 = arith.constant 0 : i32
    return %arg0, %c0_i32, %arg1 : i32, i32, i32
  }
  func.func @transform_2(%arg0: i32, %arg1: i32) -> (i32, i32) {
    %c0_i32 = arith.constant 0 : i32
    %c0_i32_0 = arith.constant 0 : i32
    %c0_i32_1 = arith.constant 0 : i32
    return %c0_i32, %c0_i32_0 : i32, i32
  }
  func.func @transform_3(%arg0: i32, %arg1: i32) -> (i32, i32) {
    %c0_i32 = arith.constant 0 : i32
    %c0_i32_0 = arith.constant 0 : i32
    %c0_i32_1 = arith.constant 0 : i32
    return %c0_i32, %c0_i32_0 : i32, i32
  }
}

</mosaic_0001>

<llo_original>
// kernel: tpu_custom_call.1
$region0: #{tpu_custom_call.1}
  #allocation0 [shape = 'u32[]', space=smem, size = 0x4, offset = 0x4, fixed_abs, tag = 'smem constant byte address 0x4 - core index']
  #allocation1 [shape = 'u32[72,128]{1,0:T(1,128)}', space=vmem, size = 0x9000, scoped, tag = 'internal scratch']
  #allocation2 [shape = 'f32[1,256]{1,0:T(1,128)}', space=vmem, size = 0x400, scoped, tag = 'scratch operand']
  %s0 = inlined_call_operand.hbm [shape: f32[2,4,256], index: 0, kind: input, shape index: {}]
  %s1 = inlined_call_operand.vmem [shape: s32[2,1,256], index: 1, kind: input, shape index: {}]
  %s2 = inlined_call_operand.vmem [shape: f32[4,1], index: 2, kind: input, shape index: {}]
  %s3 = inlined_call_operand.hbm [shape: f32[1,1], index: 3, kind: output, shape index: {}]
  %s4 = sld [smem:[#allocation0]]
  $region57: #{tpu_custom_call.1} parent=0
    _
  %s6 = ssub.s32 1, %s4
  %s7 = scalar_select 0, %s6, %s4
  $region1: #{tpu_custom_call.1} parent=0
    #allocation3 [shape = 'u8[8192]{0}', space=vmem, size = 0x2000, scoped, tag = 'input window, operand 0']
    #allocation4 [shape = 's32[2]{0}', space=sflag, size = 0x8, scoped, tag = 'scoped memory for tpu_custom_call.1']
    #allocation5 [shape = 's32[2]{0}', space=sflag, size = 0x8, scoped, tag = 'scoped memory for tpu_custom_call.1']
    #allocation6 [shape = 'u8[512]{0}', space=vmem, size = 0x400, scoped, tag = 'output window, operand 0, single buffered']
    %8 = vsyncpa [#allocation4], 0
    %s9 = scalar_lea.sflag [#allocation4], 1
    %10 = vsyncpa %s9, 0
    %11 = vsyncpa [#allocation5], 0
    loop: start=0, step=1, limit=4
    $region2: #{tpu_custom_call.1} parent=1 // loop_pre_header
      _
    $region3: #{tpu_custom_call.1} parent=1 // loop_header
      %s13 = sphi 0, %s17
      %p14 = scmp.ge.s32.totalorder %s13, 4
      %s20 = sphi 0, %s32
      %s21 = sphi 0, %s28
      %s22 = sphi 0, %s20
      %s23 = sphi 0, %s21
      %s24 = sphi 0, %s22
      %s25 = sphi 0, %s23
      %s37 = sphi 0, %s39
      %s40 = sphi 0, %s37
      %s41 = sphi 0, %s40
      %s57 = sphi 0, %s41
      %s65 = sphi 0, %s67
      %s68 = sphi 0, %s65
      %s69 = sphi 0, %s68
      %s85 = sphi 0, %s69
      %s89 = sphi 0, %s89
      %s91 = sphi 0, %s89
      %s92 = sphi 0, %s91
      %s106 = sphi 0, %s92
      %s110 = sphi 0, %s110
      %s112 = sphi 0, %s110
      %s113 = sphi 0, %s112
      %s127 = sphi 0, %s113
    $region4: #{tpu_custom_call.1} parent=1 // loop_header_branch
      %16 = sbr.rel (%p14) target = $region8
    $region5: #{tpu_custom_call.1} parent=1 // loop_body
      %s18 = ssub.s32 %s13, 1
      %s19 = ssub.s32 %s13, 2
      %s26 = sadd.s32 1, %s21
      %p27 = scmp.ge.s32.totalorder %s26, 1
      %s28 = scalar_select %p27, 0, %s26
      %s29 = sadd.s32 1, %s20
      %s30 = scalar_select %p27, %s29, %s20
      %p31 = scmp.ge.s32.totalorder %s30, 2
      %s32 = scalar_select %p31, 0, %s30
      %s33 = ssub.s32 %s20, %s32
      %s34 = ssub.s32 %s21, %s28
      %s35 = sor.u32 %s33, %s34
      %p36 = scmp.eq.s32.totalorder %s35, 0
      %s38 = sadd.s32 %s37, 1
      %s39 = scalar_select %p36, %s37, %s38
      %p42 = pneg %p36
      %p43 = scmp.eq.s32.totalorder %s13, 1
      %p44 = por %p42, %p43
      %p45 = scmp.ne.s32.totalorder %s37, %s40
      %p46 = scmp.eq.s32.totalorder %s13, 0
      %p47 = por %p45, %p46
      %p48 = scmp.ne.s32.totalorder %s37, %s40
      %p49 = scmp.eq.s32.totalorder %s18, 1
      %p50 = por %p48, %p49
      %p51 = scmp.ne.s32.totalorder %s40, %s41
      %p52 = scmp.eq.s32.totalorder %s18, 0
      %p53 = por %p51, %p52
      %p54 = scmp.ne.s32.totalorder %s40, %s41
      %p55 = scmp.eq.s32.totalorder %s19, 1
      %p56 = por %p54, %p55
      %p58 = scmp.ne.s32.totalorder %s41, %s57
      %p59 = scmp.eq.s32.totalorder %s19, 0
      %p60 = por %p58, %p59
      %s61 = ssub.s32 %s20, %s32
      %s62 = ssub.s32 %s21, %s28
      %s63 = sor.u32 %s61, %s62
      %p64 = scmp.eq.s32.totalorder %s63, 0
      %s66 = sadd.s32 %s65, 1
      %s67 = scalar_select %p64, %s65, %s66
      %p70 = pneg %p64
      %p71 = scmp.eq.s32.totalorder %s13, 1
      %p72 = por %p70, %p71
      %p73 = scmp.ne.s32.totalorder %s65, %s68
      %p74 = scmp.eq.s32.totalorder %s13, 0
      %p75 = por %p73, %p74
      %p76 = scmp.ne.s32.totalorder %s65, %s68
      %p77 = scmp.eq.s32.totalorder %s18, 1
      %p78 = por %p76, %p77
      %p79 = scmp.ne.s32.totalorder %s68, %s69
      %p80 = scmp.eq.s32.totalorder %s18, 0
      %p81 = por %p79, %p80
      %p82 = scmp.ne.s32.totalorder %s68, %s69
      %p83 = scmp.eq.s32.totalorder %s19, 1
      %p84 = por %p82, %p83
      %p86 = scmp.ne.s32.totalorder %s69, %s85
      %p87 = scmp.eq.s32.totalorder %s19, 0
      %p88 = por %p86, %p87
      %s90 = sadd.s32 %s89, 1
      %p93 = scmp.eq.s32.totalorder %s13, 1
      %p94 = scmp.ne.s32.totalorder %s89, %s91
      %p95 = scmp.eq.s32.totalorder %s13, 0
      %p96 = por %p94, %p95
      %p97 = scmp.ne.s32.totalorder %s89, %s91
      %p98 = scmp.eq.s32.totalorder %s18, 1
      %p99 = por %p97, %p98
      %p100 = scmp.ne.s32.totalorder %s91, %s92
      %p101 = scmp.eq.s32.totalorder %s18, 0
      %p102 = por %p100, %p101
      %p103 = scmp.ne.s32.totalorder %s91, %s92
      %p104 = scmp.eq.s32.totalorder %s19, 1
      %p105 = por %p103, %p104
      %p107 = scmp.ne.s32.totalorder %s92, %s106
      %p108 = scmp.eq.s32.totalorder %s19, 0
      %p109 = por %p107, %p108
      %s111 = sadd.s32 %s110, 1
      %p114 = scmp.eq.s32.totalorder %s13, 1
      %p115 = scmp.ne.s32.totalorder %s110, %s112
      %p116 = scmp.eq.s32.totalorder %s13, 0
      %p117 = por %p115, %p116
      %p118 = scmp.ne.s32.totalorder %s110, %s112
      %p119 = scmp.eq.s32.totalorder %s18, 1
      %p120 = por %p118, %p119
      %p121 = scmp.ne.s32.totalorder %s112, %s113
      %p122 = scmp.eq.s32.totalorder %s18, 0
      %p123 = por %p121, %p122
      %p124 = scmp.ne.s32.totalorder %s112, %s113
      %p125 = scmp.eq.s32.totalorder %s19, 1
      %p126 = por %p124, %p125
      %p128 = scmp.ne.s32.totalorder %s113, %s127
      %p129 = scmp.eq.s32.totalorder %s19, 0
      %p130 = por %p128, %p129
      %p131 = scmp.le.s32.totalorder 1, %s13
      %p132 = scmp.lt.s32.totalorder %s13, 3
      %p133 = pnand %p131, %p132
      %p134 = pneg %p133
      // Predicated region
      $region9: #{tpu_custom_call.1} parent=5 // pred_check
        _
      $region10: #{tpu_custom_call.1} parent=5 // pred_check_branch
        %136 = sbr.rel (%p133) target = $region12
      $region11: #{tpu_custom_call.1} parent=5 // pred_region
        %s137 = ssub.s32 %s13, 1
        // Predicated region
        $region13: #{tpu_custom_call.1} parent=11 // pred_check
          %p138 = pneg %p102
        $region14: #{tpu_custom_call.1} parent=11 // pred_check_branch
          %140 = sbr.rel (%p138) target = $region16
        $region15: #{tpu_custom_call.1} parent=11 // pred_region
          _
        $region16: #{tpu_custom_call.1} parent=11 // pred_fallthru
          _
      $region12: #{tpu_custom_call.1} parent=5 // pred_fallthru
        _
      %p141 = scmp.lt.s32.totalorder %s13, 2
      // Predicated region
      $region17: #{tpu_custom_call.1} parent=5 // pred_check
        %p142 = pneg %p141
      $region18: #{tpu_custom_call.1} parent=5 // pred_check_branch
        %144 = sbr.rel (%p142) target = $region20
      $region19: #{tpu_custom_call.1} parent=5 // pred_region
        // Predicated region
        $region21: #{tpu_custom_call.1} parent=19 // pred_check
          %p145 = pneg %p47
        $region22: #{tpu_custom_call.1} parent=19 // pred_check_branch
          %147 = sbr.rel (%p145) target = $region24
        $region23: #{tpu_custom_call.1} parent=19 // pred_region
          %s148 = sand.u32 %s37, 1
          %s149 = scalar_lea.sflag [#allocation4], %s148
          %s150 = sand.u32 %s37, 1
          %s151 = smul.addr %s150, 8
          %s152 = scalar_lea.vmem [#allocation3], %s151
          %s153 = smul.u32 2, %s21
          %155 = vsyncadd %s149, 0
          %s156 = smul.addr %s20, 2
          %s157 = sadd.s32 %s153, %s156
          %s158 = smul.addr %s157, 4
          %s159 = scalar_lea.hbm %s0, %s158
          %s161 = sshll.u32 %s159, 4
          %s162 = int_to_ptr.hbm [resolvable:$true] %s161
          %s163 = sshll.u32 %s152, 4
          %s164 = int_to_ptr.vmem [resolvable:$true] %s163
          %166 = dma.hbm_to_vmem [thread:$0]  %s162, 128, %s164, %s149
        $region24: #{tpu_custom_call.1} parent=19 // pred_fallthru
          _
        // Predicated region
        $region25: #{tpu_custom_call.1} parent=19 // pred_check
          %p167 = pneg %p75
        $region26: #{tpu_custom_call.1} parent=19 // pred_check_branch
          %169 = sbr.rel (%p167) target = $region28
        $region27: #{tpu_custom_call.1} parent=19 // pred_region
          %s170 = smul.u32 2, %s21
          %p171 = scmp.lt.s32.totalorder %s20, 1
          %s172 = scalar_select %p171, %s20, 1
          %p173 = scmp.lt.s32.totalorder %s170, 1
          %s174 = scalar_select %p173, %s170, 1
          %s175 = smul.addr %s172, 2
          %s176 = sadd.s32 %s174, %s175
          %s177 = scalar_lea.vmem %s1, %s176
          %s178 = smul.u32 2, %s21
        $region28: #{tpu_custom_call.1} parent=19 // pred_fallthru
          _
      $region20: #{tpu_custom_call.1} parent=5 // pred_fallthru
        _
      %p179 = scmp.le.s32.totalorder 1, %s13
      %p180 = scmp.lt.s32.totalorder %s13, 3
      %p181 = pnand %p179, %p180
      %p182 = pneg %p181
      // Predicated region
      $region29: #{tpu_custom_call.1} parent=5 // pred_check
        _
      $region30: #{tpu_custom_call.1} parent=5 // pred_check_branch
        %184 = sbr.rel (%p181) target = $region32
      $region31: #{tpu_custom_call.1} parent=5 // pred_region
        %s185 = ssub.s32 %s13, 1
        %s186 = sand.u32 %s40, 1
        %s187 = scalar_lea.sflag [#allocation4], %s186
        %s188 = sand.u32 %s40, 1
        %s189 = smul.addr %s188, 8
        %s190 = scalar_lea.vmem [#allocation3], %s189
        // Predicated region
        $region33: #{tpu_custom_call.1} parent=31 // pred_check
          %p191 = pneg %p53
        $region34: #{tpu_custom_call.1} parent=31 // pred_check_branch
          %193 = sbr.rel (%p191) target = $region36
        $region35: #{tpu_custom_call.1} parent=31 // pred_region
          %195 = dma.done %s187, 128
        $region36: #{tpu_custom_call.1} parent=31 // pred_fallthru
          _
        %s196 = sand.u32 %s40, 1
        %s197 = scalar_lea.sflag [#allocation4], %s196
        %s198 = sand.u32 %s40, 1
        %s199 = smul.addr %s198, 8
        %s200 = scalar_lea.vmem [#allocation3], %s199
        %p201 = pneg %p53
        %p202 = pneg %p50
        %s203 = smul.u32 2, %s23
        %p204 = scmp.lt.s32.totalorder %s22, 1
        %s205 = scalar_select %p204, %s22, 1
        %p206 = scmp.lt.s32.totalorder %s203, 1
        %s207 = scalar_select %p206, %s203, 1
        %s208 = smul.addr %s205, 2
        %s209 = sadd.s32 %s207, %s208
        %s210 = scalar_lea.vmem %s1, %s209
        %p211 = pneg %p81
        %p212 = pneg %p78
        %p213 = pneg %p102
        %p214 = pneg %p99
        %p215 = pneg %p123
        %p216 = pneg %p120
        %s217 = smul.u32 2, %s23
        %s218 = smul.u32 2, %s23
        %p219 = scmp.lt.s32.totalorder %s22, 1
        %s220 = scalar_select %p219, %s22, 1
        %p221 = scmp.lt.s32.totalorder %s218, 1
        %s222 = scalar_select %p221, %s218, 1
        %s223 = smul.addr %s220, 2
        %s224 = sadd.s32 %s222, %s223
        %s225 = scalar_lea.vmem %s1, %s224
        %s226 = smul.u32 2, %s23
        %p227 = scmp.eq.s32.totalorder %s22, 0
        %p228 = scmp.eq.s32.totalorder %s23, 0
        %p229 = pnand %p227, %p228
        %p230 = pneg %p229
        // Predicated region
        $region37: #{tpu_custom_call.1} parent=31 // pred_check
          _
        $region38: #{tpu_custom_call.1} parent=31 // pred_check_branch
          %232 = sbr.rel (%p229) target = $region40
        $region39: #{tpu_custom_call.1} parent=31 // pred_region
          %v233 = vlaneseq
          %vm234 = vcmp.ge.s32.totalorder %v233, 0
          %vm235 = vcmp.lt.s32.totalorder %v233, 256
          %vm236 = vmand %vm234, %vm235
          %237 = vst.msk [vmem:[#allocation2] sm:$0x3] %vm236, 0.0
        $region40: #{tpu_custom_call.1} parent=31 // pred_fallthru
          _
        %v238 = vld [vmem:[%s190] sm:$0xff]
        %v239 = vld [vmem:[%s225] sm:$0x3]
        %v240 = vld [vmem:[%s2] sm:$0xf]
        %v241 = vlaneseq
        %v242 = vshrl.u32 %v241, 7
        %v243 = vperm.slane %v239, 0
        %v244 = vperm.slane %v239, 1
        %vm245 = vcmp.eq.s32.totalorder %v242, %v243
        %vm246 = vcmp.eq.s32.totalorder %v242, %v244
        %v247 = vlaneseq
        %v248 = vand.u32 %v247, 127
        %v249 = vadd.s32 %v248, 128
        %s250 = smul.u32 %s23, 256
        %v251 = vstv %s250
        %v252 = vadd.s32 %v251, %v248
        %v253 = vadd.s32 %v251, %v249
        %vm254 = vcmp.lt.s32.totalorder %v252, 256
        %vm255 = vcmp.lt.s32.totalorder %v253, 256
        %257 = vst [vmem:[#allocation1] ss:$2 sm:$0xff] %v238
        %v258 = vld.sshfl [vmem:[#allocation1] sm:$0xff pattern:$0x75316420]
        %v259 = vld.sshfl [vmem:[#allocation1 + $0x8] sm:$0xff pattern:$0x75316420]
        %v262 = vsel %vm245, %v258, 0.0
        %v263 = vsel %vm246, %v259, 0.0
        %vm264 = vcmask 1043456
        %v265 = vsel %vm264, %v262, 0.0
        %v266 = vrot.slane %v265, 4
        %v267 = vadd.f32 %v265, %v266
        %v268 = vrot.slane %v267, 2
        %v269 = vadd.f32 %v267, %v268
        %v270 = vrot.slane %v269, 1
        %v271 = vadd.f32 %v269, %v270
        %v272 = vsel %vm264, %v263, 0.0
        %v273 = vrot.slane %v272, 4
        %v274 = vadd.f32 %v272, %v273
        %v275 = vrot.slane %v274, 2
        %v276 = vadd.f32 %v274, %v275
        %v277 = vrot.slane %v276, 1
        %v278 = vadd.f32 %v276, %v277
        %v279 = vsel %vm254, %v271, 1.0
        %v280 = vsel %vm255, %v278, 1.0
        %v281 = vlog2.pop %v279
        %v282 = vmul.f32 %v281, 0.6931472
        %v283 = vlog2.pop %v280
        %v284 = vmul.f32 %v283, 0.6931472
        %286 = vset.pattern.permute.xlu0 0
        %287 = vperm.xlu0 %286, %v240
        %v288 = vpop.permute.xlu0 %287
        %v290 = vsel %vm245, %v288, 0.0
        %v291 = vsel %vm246, %v288, 0.0
        %v292 = vsel %vm264, %v290, 0.0
        %v293 = vrot.slane %v292, 4
        %v294 = vadd.f32 %v292, %v293
        %v295 = vrot.slane %v294, 2
        %v296 = vadd.f32 %v294, %v295
        %v297 = vrot.slane %v296, 1
        %v298 = vadd.f32 %v296, %v297
        %v299 = vsel %vm264, %v291, 0.0
        %v300 = vrot.slane %v299, 4
        %v301 = vadd.f32 %v299, %v300
        %v302 = vrot.slane %v301, 2
        %v303 = vadd.f32 %v301, %v302
        %v304 = vrot.slane %v303, 1
        %v305 = vadd.f32 %v303, %v304
        %v306 = vsel %vm254, %v298, 0.0
        %v307 = vsel %vm255, %v305, 0.0
        %v308 = vsub.f32 1.0, %v279
        %v309 = vsub.f32 1.0, %v280
        %v310 = vmul.f32 %v308, %v308
        %v311 = vmul.f32 %v309, %v309
        %v312 = vmul.f32 %v310, %v306
        %v313 = vmul.f32 %v311, %v307
        %v314 = vmul.f32 %v312, %v282
        %v315 = vmul.f32 %v313, %v284
        %v316 = vsub.f32 0.0, %v314
        %v317 = vsub.f32 0.0, %v315
        %v318 = vld [vmem:[#allocation2] sm:$0x3]
        %v319 = vsel %vm254, %v316, 0.0
        %v320 = vsel %vm255, %v317, 0.0
        %v323 = vrot.slane %v320, 7
        %vm324 = vcmask 1040384
        %v325 = vsel %vm324, %v319, %v323
        %v327 = vadd.f32 %v318, %v325
        %v328 = vlaneseq
        %vm329 = vcmp.ge.s32.totalorder %v328, 0
        %vm330 = vcmp.lt.s32.totalorder %v328, 256
        %vm331 = vmand %vm329, %vm330
        %332 = vst.msk [vmem:[#allocation2] sm:$0x3] %vm331, %v327
        %p333 = scmp.eq.s32.totalorder %s22, 1
        %p334 = pnand %p333, %p228
        %p335 = pneg %p334
        // Predicated region
        $region41: #{tpu_custom_call.1} parent=31 // pred_check
          _
        $region42: #{tpu_custom_call.1} parent=31 // pred_check_branch
          %337 = sbr.rel (%p334) target = $region44
        $region43: #{tpu_custom_call.1} parent=31 // pred_region
          %v338 = vld [vmem:[#allocation2] sm:$0x3]
          %v340 = vperm.slane %v338, 0
          %v341 = vperm.slane %v338, 1
          %v344 = vsel %vm324, %v340, 0.0
          %v345 = vsel %vm324, %v341, 0.0
          %v346 = vadd.f32 %v344, %v345
          %347 = vadd.xlane.f32.xlu0 %v346
          %v348 = vpop.xlane.xlu0 %347
          %v349 = vrot.slane %v348, 4
          %v350 = vadd.f32 %v348, %v349
          %v351 = vrot.slane %v350, 2
          %v352 = vadd.f32 %v350, %v351
          %v353 = vrot.slane %v352, 1
          %v354 = vadd.f32 %v352, %v353
          %s355 = vtos %v354
          %v356 = vstv %s355
          %v357 = vmul.f32 %v356, 0.001953125
          %vm358 = vcmask 0
          %359 = vst.msk [vmem:[#allocation6] sm:$0x1] %vm358, %v357
        $region44: #{tpu_custom_call.1} parent=31 // pred_fallthru
          _
        // Predicated region
        $region45: #{tpu_custom_call.1} parent=31 // pred_check
          %p360 = pneg %p120
        $region46: #{tpu_custom_call.1} parent=31 // pred_check_branch
          %362 = sbr.rel (%p360) target = $region48
        $region47: #{tpu_custom_call.1} parent=31 // pred_region
          %364 = vsyncadd [#allocation5], 0
          %s366 = sshll.u32 [#allocation6], 4
          %s367 = int_to_ptr.vmem [resolvable:$true] %s366
          %s368 = sshll.u32 %s3, 4
          %s369 = int_to_ptr.hbm [resolvable:$true] %s368
          %371 = dma.vmem_to_hbm [thread:$0]  %s367, 16, %s369, [#allocation5]
        $region48: #{tpu_custom_call.1} parent=31 // pred_fallthru
          _
        // Predicated region
        $region49: #{tpu_custom_call.1} parent=31 // pred_check
          %p372 = pneg %p120
        $region50: #{tpu_custom_call.1} parent=31 // pred_check_branch
          %374 = sbr.rel (%p372) target = $region52
        $region51: #{tpu_custom_call.1} parent=31 // pred_region
          %376 = dma.done [#allocation5], 16
        $region52: #{tpu_custom_call.1} parent=31 // pred_fallthru
          _
      $region32: #{tpu_custom_call.1} parent=5 // pred_fallthru
        _
      %p377 = scmp.le.s32.totalorder 2, %s13
      // Predicated region
      $region53: #{tpu_custom_call.1} parent=5 // pred_check
        %p378 = pneg %p377
      $region54: #{tpu_custom_call.1} parent=5 // pred_check_branch
        %380 = sbr.rel (%p378) target = $region56
      $region55: #{tpu_custom_call.1} parent=5 // pred_region
        %s381 = ssub.s32 %s13, 2
      $region56: #{tpu_custom_call.1} parent=5 // pred_fallthru
        _
    $region6: #{tpu_custom_call.1} parent=1 // loop_footer
      %s17 = sadd.s32 1, %s13
    $region7: #{tpu_custom_call.1} parent=1 // loop_footer_branch
      %12 = sbr.rel target = $region3
    $region8: #{tpu_custom_call.1} parent=1 // loop_exit
      _
    %382 = vsyncpa [#allocation4], 1
    %s383 = scalar_lea.sflag [#allocation4], 1
    %384 = vsyncpa %s383, 1
    %385 = vsyncpa [#allocation5], 1
    %s386 = scalar_lea.sflag [#allocation5], 1
    %387 = vsyncpa %s386, 1

</llo_original>
